<compile_context>
chip_gen: v7x
topology: tpu7x:2x2x1
jax: 0.10.0
libtpu: 0.0.40
codegen_flags: <defaults>
</compile_context>

<pallas_src>
import functools

import jax
import jax.numpy as jnp
import numpy as np
from jax import lax
from jax.experimental import pallas as pl
from jax.experimental.pallas import tpu as pltpu


def _onr_kernel(gen_ref, out_ref, prev_u_ref, prev_z_ref, m_acc, z_acc, pair_acc,
                *, tau, block_s, chunk_v, num_chunks):
    t = pl.program_id(1)

    # Reset the cross-tile carry at the start of every batch row.
    @pl.when(t == 0)
    def _():
        prev_u_ref[...] = jnp.zeros_like(prev_u_ref)
        prev_z_ref[...] = jnp.ones_like(prev_z_ref)

    unroll = num_chunks <= 8

    def for_each_chunk(fn):
        if num_chunks == 1:
            fn(0)                                    # static offset, no dyn slice
        else:
            def wrapped(c, carry):
                fn(c)
                return carry
            lax.fori_loop(0, num_chunks, wrapped, 0, unroll=unroll)

    def chunk_off(c):
        off = c * chunk_v
        if not isinstance(off, int) and chunk_v % 128 == 0:
            off = pl.multiple_of(off, 128)           # lane-aligned dynamic start
        return off

    # ---- Pass 1: chunked per-row extremum of the logits (m = max(tau*g)). ----
    m_acc[...] = jnp.full(m_acc.shape, -jnp.inf if tau >= 0 else jnp.inf,
                          dtype=jnp.float32)

    def max_body(c):
        off = chunk_off(c)
        gc = gen_ref[0, :, pl.ds(off, chunk_v)]      # (TS, C), native dtype
        if tau >= 0:
            red = jnp.max(gc, axis=-1, keepdims=True).astype(jnp.float32)
            m_acc[...] = jnp.maximum(m_acc[...], red)
        else:
            red = jnp.min(gc, axis=-1, keepdims=True).astype(jnp.float32)
            m_acc[...] = jnp.minimum(m_acc[...], red)

    for_each_chunk(max_body)
    m = m_acc[...] * tau                             # (TS, 1), == rowmax(tau*g)

    # ---- Pass 2: chunked exp / neighbor-pair / partition-sum accumulation. ----
    pair_acc[...] = jnp.zeros_like(pair_acc)
    z_acc[...] = jnp.zeros_like(z_acc)
    rid = lax.broadcasted_iota(jnp.int32, (block_s, 1), 0)
    is_row0 = rid == 0                               # hoisted out of the loop

    def body(c):
        off = chunk_off(c)
        gc = gen_ref[0, :, pl.ds(off, chunk_v)].astype(jnp.float32)   # (TS, C)
        u = jnp.exp(gc * tau - m)                                     # (TS, C)
        u_left = pltpu.roll(u, 1, 0)                                  # u_left[r] = u[r-1]
        prev_c = prev_u_ref[:, pl.ds(off, chunk_v)]                   # (1, C) prev-tile last row
        u_left = jnp.where(is_row0, prev_c, u_left)
        pair_acc[...] += jnp.sum(u * u_left, axis=-1, keepdims=True)
        z_acc[...] += jnp.sum(u, axis=-1, keepdims=True)
        # Carry this tile's last row for the next tile (read above came first).
        prev_u_ref[:, pl.ds(off, chunk_v)] = u[block_s - 1:block_s, :]

    for_each_chunk(body)

    z = z_acc[...]                                   # (TS, 1)
    z_left = pltpu.roll(z, 1, 0)
    z_left = jnp.where(is_row0, prev_z_ref[...], z_left)

    # overlap[r] = <p[r-1], p[r]>, stored at row r.  Row 0 of the first tile is
    # 0 because the carry was initialized to u=0, Z=1.
    overlap = pair_acc[...] / (z_left * z)
    out_ref[0] = overlap

    prev_z_ref[...] = z[block_s - 1:block_s, :]


def _pick_block_s(S, V, itemsize, vmem_cap):
    """Sequence tile (multiple of 8) targeting ~1/8 of VMEM per input buffer."""
    target = max(2 * 1024 * 1024, vmem_cap // 8)     # 16 MiB on 128 MiB chips, 8 MiB on v7x
    ts = target // max(1, V * itemsize)
    s_round8 = ((S + 7) // 8) * 8
    ts = max(8, min((ts // 8) * 8, s_round8))
    return ts


def _pick_chunk_v(V, target=1024):
    """Lane-chunk of the vocab axis: divisor of V, multiple of 128, <= target."""
    if V <= target:
        return V
    c = (target // 128) * 128
    while c >= 128:
        if V % c == 0:
            return c
        c -= 128
    return V   # no lane-aligned divisor -> single chunk fallback


def orthogonal_neighbors_regularization(generation, non_pad_mask, *, tau,
                                        block_s=None, chunk_v=None):
    """generation: (B, S, V) logits (f32 or bf16), non_pad_mask: (B, S). Returns scalar."""
    B, S, V = generation.shape
    itemsize = jnp.dtype(generation.dtype).itemsize
    try:
        vmem_cap = int(pltpu.get_tpu_info().vmem_capacity_bytes)
    except Exception:
        vmem_cap = 64 * 1024 * 1024                  # conservative (v7x per-core)

    if block_s is None:
        block_s = _pick_block_s(S, V, itemsize, vmem_cap)
    assert block_s % 8 == 0, "block_s must be a multiple of 8"
    if chunk_v is None:
        chunk_v = _pick_chunk_v(V)
    assert V % chunk_v == 0, "chunk_v must divide V"
    num_chunks = V // chunk_v
    if num_chunks > 1:
        assert chunk_v % 128 == 0, "multi-chunk requires lane-aligned chunk_v"

    # Pad S up to a multiple of block_s. overlap[r] only touches rows r-1 and r,
    # so padded rows never affect the real outputs (they're sliced off below).
    S_pad = ((S + block_s - 1) // block_s) * block_s
    if S_pad != S:
        generation = jnp.pad(generation, ((0, 0), (0, S_pad - S), (0, 0)))
    num_t = S_pad // block_s

    kernel = functools.partial(_onr_kernel, tau=float(tau), block_s=block_s,
                               chunk_v=chunk_v, num_chunks=num_chunks)

    # VMEM footprint estimate (tile-padding aware) -> vmem_limit hint.
    in_bufs = 2 * block_s * V * itemsize                       # double-buffered input
    out_bufs = 2 * block_s * 128 * 4                           # (1,TS,1) pads lanes to 128
    carry = 8 * V * 4 + 8 * 128 * 4                            # prev_u, prev_z (sublane pad to 8)
    accs = 3 * block_s * 128 * 4                               # m/z/pair accumulators
    chunk_work = 6 * block_s * chunk_v * 4                     # in-flight chunk intermediates
    footprint = in_bufs + out_bufs + carry + accs + chunk_work
    vmem_limit = int(min(vmem_cap, max(32 << 20, footprint * 5 // 4 + (4 << 20))))

    cost = pl.CostEstimate(
        flops=6 * B * S_pad * V,
        transcendentals=B * S_pad * V,
        bytes_accessed=B * S_pad * V * itemsize + B * S_pad * 4,
    )

    overlaps = pl.pallas_call(
        kernel,
        out_shape=jax.ShapeDtypeStruct((B, S_pad, 1), jnp.float32),
        grid_spec=pltpu.PrefetchScalarGridSpec(
            num_scalar_prefetch=0,
            grid=(B, num_t),
            in_specs=[pl.BlockSpec((1, block_s, V), lambda b, t: (b, t, 0))],
            out_specs=pl.BlockSpec((1, block_s, 1), lambda b, t: (b, t, 0)),
            scratch_shapes=[
                pltpu.VMEM((1, V), jnp.float32),        # carried u of prev tile's last row
                pltpu.VMEM((1, 1), jnp.float32),        # carried Z of prev tile's last row
                pltpu.VMEM((block_s, 1), jnp.float32),  # row-extremum accumulator
                pltpu.VMEM((block_s, 1), jnp.float32),  # Z accumulator
                pltpu.VMEM((block_s, 1), jnp.float32),  # neighbor-pair accumulator
            ],
        ),
        compiler_params=pltpu.CompilerParams(
            dimension_semantics=("parallel", "arbitrary"),
            vmem_limit_bytes=vmem_limit,
        ),
        cost_estimate=cost,
    )(generation)

    # Mask weighting + scalar reduction are tiny (B x S) -> plain JAX epilogue.
    mask = non_pad_mask[:, 1:].astype(jnp.float32)   # (B, S-1)
    reg = overlaps[:, 1:S, 0]                        # overlaps[b, j] = <p[j-1], p[j]>
    return jnp.sum(reg * mask) / jnp.sum(mask)


def _reference(generation, non_pad_mask, tau):
    p = jax.nn.softmax(generation, axis=-1)
    p = p ** tau
    p = p / p.sum(axis=-1, keepdims=True)
    left, right = p[:, :-1, :], p[:, 1:, :]
    reg = (left * right).sum(-1)
    m = non_pad_mask[:, 1:]
    return (reg * m).sum() / m.sum()


if __name__ == "__main__":
    key = jax.random.PRNGKey(0)
    B, S, V = 2, 12, 256
    tau = 0.5

    k1, _ = jax.random.split(key)
    generation = jax.random.normal(k1, (B, S, V), dtype=jnp.float32)

    # Deterministic non-pad mask: first sequence has 9 valid tokens, second has 12.
    lengths = jnp.array([9, 12], dtype=jnp.int32)
    non_pad_mask = (jnp.arange(S)[None, :] < lengths[:, None]).astype(jnp.float32)

    # block_s=8 with S=12 -> S padded to 16, 2 sequence tiles per batch row
    # (exercises the cross-tile carry and the S-padding path); chunk_v=128 with
    # V=256 -> 2 vocab chunks (exercises the in-kernel chunked accumulation).
    out = orthogonal_neighbors_regularization(
        generation, non_pad_mask, tau=tau, block_s=8, chunk_v=128)
    out = jax.block_until_ready(out)

    ref = _reference(generation, non_pad_mask, tau)
    np.testing.assert_allclose(np.asarray(out), np.asarray(ref), rtol=1e-4, atol=1e-6)

    print("KERNEL_OK")
</pallas_src>

<mosaic_0001>
module attributes {stable_mosaic.version = 11 : i64} {
  func.func @_onr_kernel(%arg0: i32, %arg1: i32, %arg2: memref<1x8x256xf32, #tpu.memory_space<vmem>>, %arg3: memref<1x8x1xf32, #tpu.memory_space<vmem>>, %arg4: memref<1x256xf32, #tpu.memory_space<vmem>>, %arg5: memref<1x1xf32, #tpu.memory_space<vmem>>, %arg6: memref<8x1xf32, #tpu.memory_space<vmem>>, %arg7: memref<8x1xf32, #tpu.memory_space<vmem>>, %arg8: memref<8x1xf32, #tpu.memory_space<vmem>>) attributes {dimension_semantics = [#tpu.dimension_semantics<parallel>, #tpu.dimension_semantics<arbitrary>], iteration_bounds = array<i64: 2, 2>, scalar_prefetch = 0 : i64, scratch_operands = 5 : i64, tpu.core_type = #tpu.core_type<tc>, window_params = [{transform_indices = @transform_0, window_bounds = array<i64: 1, 8, 256>}, {transform_indices = @transform_1, window_bounds = array<i64: 1, 8, 1>}]} {
    %c0_i32 = arith.constant 0 : i32
    %0 = arith.cmpi eq, %arg1, %c0_i32 : i32
    %1 = arith.extui %0 : i1 to i32
    %c0_i32_0 = arith.constant 0 : i32
    %2 = arith.cmpi ne, %1, %c0_i32_0 : i32
    scf.if %2 {
      %cst_77 = arith.constant 0.000000e+00 : f32
      %113 = vector.broadcast %cst_77 : f32 to vector<1x256xf32>
      %c0_78 = arith.constant 0 : index
      %c0_79 = arith.constant 0 : index
      %114 = vector.load %arg4[%c0_78, %c0_79] : memref<1x256xf32, #tpu.memory_space<vmem>>, vector<1x256xf32>
      tpu.vector_store %arg4[%c0_78, %c0_79], %113 {strides = array<i32>} : memref<1x256xf32, #tpu.memory_space<vmem>>, vector<1x256xf32>,
      %cst_80 = arith.constant 1.000000e+00 : f32
      %115 = vector.broadcast %cst_80 : f32 to vector<1x1xf32>
      %c0_81 = arith.constant 0 : index
      %c0_82 = arith.constant 0 : index
      %116 = vector.load %arg5[%c0_81, %c0_82] : memref<1x1xf32, #tpu.memory_space<vmem>>, vector<1x1xf32>
      tpu.vector_store %arg5[%c0_81, %c0_82], %115 {strides = array<i32>} : memref<1x1xf32, #tpu.memory_space<vmem>>, vector<1x1xf32>,
    } else {
    }
    %cst = arith.constant 0xFF800000 : f32
    %3 = vector.broadcast %cst : f32 to vector<8x1xf32>
    %c0 = arith.constant 0 : index
    %c0_1 = arith.constant 0 : index
    %4 = vector.load %arg6[%c0, %c0_1] : memref<8x1xf32, #tpu.memory_space<vmem>>, vector<8x1xf32>
    tpu.vector_store %arg6[%c0, %c0_1], %3 {strides = array<i32>} : memref<8x1xf32, #tpu.memory_space<vmem>>, vector<8x1xf32>,
    %c0_i32_2 = arith.constant 0 : i32
    %c128_i32 = arith.constant 128 : i32
    %5 = arith.muli %c0_i32_2, %c128_i32 : i32
    %6 = tpu.assume_multiple %5, 128 : i32
    %c0_3 = arith.constant 0 : index
    %c0_4 = arith.constant 0 : index
    %7 = arith.index_cast %6 : i32 to index
    %8 = vector.load %arg2[%c0_3, %c0_4, %7] : memref<1x8x256xf32, #tpu.memory_space<vmem>>, vector<1x8x128xf32>
    %9 = vector.shape_cast %8 : vector<1x8x128xf32> to vector<8x128xf32>
    %cst_5 = arith.constant dense<0xFF800000> : vector<8xf32>
    %10 = vector.multi_reduction <maximumf>, %9, %cst_5 [1] : vector<8x128xf32> to vector<8xf32>
    %11 = vector.shape_cast %10 : vector<8xf32> to vector<8x1xf32>
    %c0_6 = arith.constant 0 : index
    %c0_7 = arith.constant 0 : index
    %12 = vector.load %arg6[%c0_6, %c0_7] : memref<8x1xf32, #tpu.memory_space<vmem>>, vector<8x1xf32>
    %13 = arith.maximumf %12, %11 : vector<8x1xf32>
    %c0_8 = arith.constant 0 : index
    %c0_9 = arith.constant 0 : index
    %14 = vector.load %arg6[%c0_8, %c0_9] : memref<8x1xf32, #tpu.memory_space<vmem>>, vector<8x1xf32>
    tpu.vector_store %arg6[%c0_8, %c0_9], %13 {strides = array<i32>} : memref<8x1xf32, #tpu.memory_space<vmem>>, vector<8x1xf32>,
    %c1_i32 = arith.constant 1 : i32
    %c128_i32_10 = arith.constant 128 : i32
    %15 = arith.muli %c1_i32, %c128_i32_10 : i32
    %16 = tpu.assume_multiple %15, 128 : i32
    %c0_11 = arith.constant 0 : index
    %c0_12 = arith.constant 0 : index
    %17 = arith.index_cast %16 : i32 to index
    %18 = vector.load %arg2[%c0_11, %c0_12, %17] : memref<1x8x256xf32, #tpu.memory_space<vmem>>, vector<1x8x128xf32>
    %19 = vector.shape_cast %18 : vector<1x8x128xf32> to vector<8x128xf32>
    %cst_13 = arith.constant dense<0xFF800000> : vector<8xf32>
    %20 = vector.multi_reduction <maximumf>, %19, %cst_13 [1] : vector<8x128xf32> to vector<8xf32>
    %21 = vector.shape_cast %20 : vector<8xf32> to vector<8x1xf32>
    %c0_14 = arith.constant 0 : index
    %c0_15 = arith.constant 0 : index
    %22 = vector.load %arg6[%c0_14, %c0_15] : memref<8x1xf32, #tpu.memory_space<vmem>>, vector<8x1xf32>
    %23 = arith.maximumf %22, %21 : vector<8x1xf32>
    %c0_16 = arith.constant 0 : index
    %c0_17 = arith.constant 0 : index
    %24 = vector.load %arg6[%c0_16, %c0_17] : memref<8x1xf32, #tpu.memory_space<vmem>>, vector<8x1xf32>
    tpu.vector_store %arg6[%c0_16, %c0_17], %23 {strides = array<i32>} : memref<8x1xf32, #tpu.memory_space<vmem>>, vector<8x1xf32>,
    %c2_i32 = arith.constant 2 : i32
    %c0_18 = arith.constant 0 : index
    %c0_19 = arith.constant 0 : index
    %25 = vector.load %arg6[%c0_18, %c0_19] : memref<8x1xf32, #tpu.memory_space<vmem>>, vector<8x1xf32>
    %cst_20 = arith.constant 5.000000e-01 : f32
    %26 = vector.broadcast %cst_20 : f32 to vector<8x1xf32>
    %27 = arith.mulf %25, %26 : vector<8x1xf32>
    %cst_21 = arith.constant 0.000000e+00 : f32
    %28 = vector.broadcast %cst_21 : f32 to vector<8x1xf32>
    %c0_22 = arith.constant 0 : index
    %c0_23 = arith.constant 0 : index
    %29 = vector.load %arg8[%c0_22, %c0_23] : memref<8x1xf32, #tpu.memory_space<vmem>>, vector<8x1xf32>
    tpu.vector_store %arg8[%c0_22, %c0_23], %28 {strides = array<i32>} : memref<8x1xf32, #tpu.memory_space<vmem>>, vector<8x1xf32>,
    %cst_24 = arith.constant 0.000000e+00 : f32
    %30 = vector.broadcast %cst_24 : f32 to vector<8x1xf32>
    %c0_25 = arith.constant 0 : index
    %c0_26 = arith.constant 0 : index
    %31 = vector.load %arg7[%c0_25, %c0_26] : memref<8x1xf32, #tpu.memory_space<vmem>>, vector<8x1xf32>
    tpu.vector_store %arg7[%c0_25, %c0_26], %30 {strides = array<i32>} : memref<8x1xf32, #tpu.memory_space<vmem>>, vector<8x1xf32>,
    %32 = tpu.iota {dimensions = array<i32: 0>} : vector<8x1xi32>
    %c0_i32_27 = arith.constant 0 : i32
    %33 = vector.broadcast %c0_i32_27 : i32 to vector<8x1xi32>
    %34 = arith.cmpi eq, %32, %33 : vector<8x1xi32>
    %c0_i32_28 = arith.constant 0 : i32
    %c128_i32_29 = arith.constant 128 : i32
    %35 = arith.muli %c0_i32_28, %c128_i32_29 : i32
    %36 = tpu.assume_multiple %35, 128 : i32
    %c0_30 = arith.constant 0 : index
    %c0_31 = arith.constant 0 : index
    %37 = arith.index_cast %36 : i32 to index
    %38 = vector.load %arg2[%c0_30, %c0_31, %37] : memref<1x8x256xf32, #tpu.memory_space<vmem>>, vector<1x8x128xf32>
    %39 = vector.shape_cast %38 : vector<1x8x128xf32> to vector<8x128xf32>
    %cst_32 = arith.constant 5.000000e-01 : f32
    %40 = vector.broadcast %cst_32 : f32 to vector<8x128xf32>
    %41 = arith.mulf %39, %40 : vector<8x128xf32>
    %42 = vector.broadcast %27 : vector<8x1xf32> to vector<8x128xf32>
    %43 = arith.subf %41, %42 : vector<8x128xf32>
    %44 = math.exp %43 : vector<8x128xf32>
    %c1_i32_33 = arith.constant 1 : i32
    %45 = tpu.dynamic_rotate %44 by %c1_i32_33 dim 0 : vector<8x128xf32>, i32 -> vector<8x128xf32>
    %c0_34 = arith.constant 0 : index
    %46 = arith.index_cast %36 : i32 to index
    %47 = vector.load %arg4[%c0_34, %46] : memref<1x256xf32, #tpu.memory_space<vmem>>, vector<1x128xf32>
    %48 = vector.shape_cast %34 : vector<8x1xi1> to vector<8x1xi1>
    %49 = vector.broadcast %48 : vector<8x1xi1> to vector<8x128xi1>
    %50 = vector.shape_cast %47 : vector<1x128xf32> to vector<1x128xf32>
    %51 = vector.broadcast %50 : vector<1x128xf32> to vector<8x128xf32>
    %52 = arith.select %49, %51, %45 : vector<8x128xi1>, vector<8x128xf32>
    %c0_35 = arith.constant 0 : index
    %c0_36 = arith.constant 0 : index
    %53 = vector.load %arg8[%c0_35, %c0_36] : memref<8x1xf32, #tpu.memory_space<vmem>>, vector<8x1xf32>
    %54 = arith.mulf %44, %52 : vector<8x128xf32>
    %cst_37 = arith.constant dense<0.000000e+00> : vector<8xf32>
    %55 = vector.multi_reduction <add>, %54, %cst_37 [1] : vector<8x128xf32> to vector<8xf32>
    %56 = vector.shape_cast %55 : vector<8xf32> to vector<8x1xf32>
    %57 = arith.addf %53, %56 : vector<8x1xf32>
    %c0_38 = arith.constant 0 : index
    %c0_39 = arith.constant 0 : index
    %58 = vector.load %arg8[%c0_38, %c0_39] : memref<8x1xf32, #tpu.memory_space<vmem>>, vector<8x1xf32>
    tpu.vector_store %arg8[%c0_38, %c0_39], %57 {strides = array<i32>} : memref<8x1xf32, #tpu.memory_space<vmem>>, vector<8x1xf32>,
    %c0_40 = arith.constant 0 : index
    %c0_41 = arith.constant 0 : index
    %59 = vector.load %arg7[%c0_40, %c0_41] : memref<8x1xf32, #tpu.memory_space<vmem>>, vector<8x1xf32>
    %cst_42 = arith.constant dense<0.000000e+00> : vector<8xf32>
    %60 = vector.multi_reduction <add>, %44, %cst_42 [1] : vector<8x128xf32> to vector<8xf32>
    %61 = vector.shape_cast %60 : vector<8xf32> to vector<8x1xf32>
    %62 = arith.addf %59, %61 : vector<8x1xf32>
    %c0_43 = arith.constant 0 : index
    %c0_44 = arith.constant 0 : index
    %63 = vector.load %arg7[%c0_43, %c0_44] : memref<8x1xf32, #tpu.memory_space<vmem>>, vector<8x1xf32>
    tpu.vector_store %arg7[%c0_43, %c0_44], %62 {strides = array<i32>} : memref<8x1xf32, #tpu.memory_space<vmem>>, vector<8x1xf32>,
    %64 = vector.extract_strided_slice %44 {offsets = [7, 0], sizes = [1, 128], strides = [1, 1]} : vector<8x128xf32> to vector<1x128xf32>
    %c0_45 = arith.constant 0 : index
    %65 = arith.index_cast %36 : i32 to index
    %66 = vector.load %arg4[%c0_45, %65] : memref<1x256xf32, #tpu.memory_space<vmem>>, vector<1x128xf32>
    tpu.vector_store %arg4[%c0_45, %65], %64 {strides = array<i32>} : memref<1x256xf32, #tpu.memory_space<vmem>>, vector<1x128xf32>,
    %c1_i32_46 = arith.constant 1 : i32
    %c128_i32_47 = arith.constant 128 : i32
    %67 = arith.muli %c1_i32_46, %c128_i32_47 : i32
    %68 = tpu.assume_multiple %67, 128 : i32
    %c0_48 = arith.constant 0 : index
    %c0_49 = arith.constant 0 : index
    %69 = arith.index_cast %68 : i32 to index
    %70 = vector.load %arg2[%c0_48, %c0_49, %69] : memref<1x8x256xf32, #tpu.memory_space<vmem>>, vector<1x8x128xf32>
    %71 = vector.shape_cast %70 : vector<1x8x128xf32> to vector<8x128xf32>
    %cst_50 = arith.constant 5.000000e-01 : f32
    %72 = vector.broadcast %cst_50 : f32 to vector<8x128xf32>
    %73 = arith.mulf %71, %72 : vector<8x128xf32>
    %74 = vector.broadcast %27 : vector<8x1xf32> to vector<8x128xf32>
    %75 = arith.subf %73, %74 : vector<8x128xf32>
    %76 = math.exp %75 : vector<8x128xf32>
    %c1_i32_51 = arith.constant 1 : i32
    %77 = tpu.dynamic_rotate %76 by %c1_i32_51 dim 0 : vector<8x128xf32>, i32 -> vector<8x128xf32>
    %c0_52 = arith.constant 0 : index
    %78 = arith.index_cast %68 : i32 to index
    %79 = vector.load %arg4[%c0_52, %78] : memref<1x256xf32, #tpu.memory_space<vmem>>, vector<1x128xf32>
    %80 = vector.shape_cast %34 : vector<8x1xi1> to vector<8x1xi1>
    %81 = vector.broadcast %80 : vector<8x1xi1> to vector<8x128xi1>
    %82 = vector.shape_cast %79 : vector<1x128xf32> to vector<1x128xf32>
    %83 = vector.broadcast %82 : vector<1x128xf32> to vector<8x128xf32>
    %84 = arith.select %81, %83, %77 : vector<8x128xi1>, vector<8x128xf32>
    %c0_53 = arith.constant 0 : index
    %c0_54 = arith.constant 0 : index
    %85 = vector.load %arg8[%c0_53, %c0_54] : memref<8x1xf32, #tpu.memory_space<vmem>>, vector<8x1xf32>
    %86 = arith.mulf %76, %84 : vector<8x128xf32>
    %cst_55 = arith.constant dense<0.000000e+00> : vector<8xf32>
    %87 = vector.multi_reduction <add>, %86, %cst_55 [1] : vector<8x128xf32> to vector<8xf32>
    %88 = vector.shape_cast %87 : vector<8xf32> to vector<8x1xf32>
    %89 = arith.addf %85, %88 : vector<8x1xf32>
    %c0_56 = arith.constant 0 : index
    %c0_57 = arith.constant 0 : index
    %90 = vector.load %arg8[%c0_56, %c0_57] : memref<8x1xf32, #tpu.memory_space<vmem>>, vector<8x1xf32>
    tpu.vector_store %arg8[%c0_56, %c0_57], %89 {strides = array<i32>} : memref<8x1xf32, #tpu.memory_space<vmem>>, vector<8x1xf32>,
    %c0_58 = arith.constant 0 : index
    %c0_59 = arith.constant 0 : index
    %91 = vector.load %arg7[%c0_58, %c0_59] : memref<8x1xf32, #tpu.memory_space<vmem>>, vector<8x1xf32>
    %cst_60 = arith.constant dense<0.000000e+00> : vector<8xf32>
    %92 = vector.multi_reduction <add>, %76, %cst_60 [1] : vector<8x128xf32> to vector<8xf32>
    %93 = vector.shape_cast %92 : vector<8xf32> to vector<8x1xf32>
    %94 = arith.addf %91, %93 : vector<8x1xf32>
    %c0_61 = arith.constant 0 : index
    %c0_62 = arith.constant 0 : index
    %95 = vector.load %arg7[%c0_61, %c0_62] : memref<8x1xf32, #tpu.memory_space<vmem>>, vector<8x1xf32>
    tpu.vector_store %arg7[%c0_61, %c0_62], %94 {strides = array<i32>} : memref<8x1xf32, #tpu.memory_space<vmem>>, vector<8x1xf32>,
    %96 = vector.extract_strided_slice %76 {offsets = [7, 0], sizes = [1, 128], strides = [1, 1]} : vector<8x128xf32> to vector<1x128xf32>
    %c0_63 = arith.constant 0 : index
    %97 = arith.index_cast %68 : i32 to index
    %98 = vector.load %arg4[%c0_63, %97] : memref<1x256xf32, #tpu.memory_space<vmem>>, vector<1x128xf32>
    tpu.vector_store %arg4[%c0_63, %97], %96 {strides = array<i32>} : memref<1x256xf32, #tpu.memory_space<vmem>>, vector<1x128xf32>,
    %c2_i32_64 = arith.constant 2 : i32
    %c0_65 = arith.constant 0 : index
    %c0_66 = arith.constant 0 : index
    %99 = vector.load %arg7[%c0_65, %c0_66] : memref<8x1xf32, #tpu.memory_space<vmem>>, vector<8x1xf32>
    %c1_i32_67 = arith.constant 1 : i32
    %100 = tpu.dynamic_rotate %99 by %c1_i32_67 dim 0 : vector<8x1xf32>, i32 -> vector<8x1xf32>
    %c0_68 = arith.constant 0 : index
    %c0_69 = arith.constant 0 : index
    %101 = vector.load %arg5[%c0_68, %c0_69] : memref<1x1xf32, #tpu.memory_space<vmem>>, vector<1x1xf32>
    %102 = vector.shape_cast %101 : vector<1x1xf32> to vector<1x1xf32>
    %103 = vector.broadcast %102 : vector<1x1xf32> to vector<8x1xf32>
    %104 = arith.select %34, %103, %100 : vector<8x1xi1>, vector<8x1xf32>
    %c0_70 = arith.constant 0 : index
    %c0_71 = arith.constant 0 : index
    %105 = vector.load %arg8[%c0_70, %c0_71] : memref<8x1xf32, #tpu.memory_space<vmem>>, vector<8x1xf32>
    %106 = arith.mulf %104, %99 : vector<8x1xf32>
    %107 = arith.divf %105, %106 : vector<8x1xf32>
    %c0_72 = arith.constant 0 : index
    %c0_73 = arith.constant 0 : index
    %c0_74 = arith.constant 0 : index
    %108 = vector.load %arg3[%c0_72, %c0_73, %c0_74] : memref<1x8x1xf32, #tpu.memory_space<vmem>>, vector<1x8x1xf32>
    %109 = vector.shape_cast %108 : vector<1x8x1xf32> to vector<8x1xf32>
    %110 = vector.shape_cast %107 : vector<8x1xf32> to vector<1x8x1xf32>
    tpu.vector_store %arg3[%c0_72, %c0_73, %c0_74], %110 {strides = array<i32>} : memref<1x8x1xf32, #tpu.memory_space<vmem>>, vector<1x8x1xf32>,
    %111 = vector.extract_strided_slice %99 {offsets = [7, 0], sizes = [1, 1], strides = [1, 1]} : vector<8x1xf32> to vector<1x1xf32>
    %c0_75 = arith.constant 0 : index
    %c0_76 = arith.constant 0 : index
    %112 = vector.load %arg5[%c0_75, %c0_76] : memref<1x1xf32, #tpu.memory_space<vmem>>, vector<1x1xf32>
    tpu.vector_store %arg5[%c0_75, %c0_76], %111 {strides = array<i32>} : memref<1x1xf32, #tpu.memory_space<vmem>>, vector<1x1xf32>,
    return
  }
  func.func @transform_0(%arg0: i32, %arg1: i32) -> (i32, i32, i32) {
    %c0_i32 = arith.constant 0 : i32
    %c0_i32_0 = arith.constant 0 : i32
    return %arg0, %arg1, %c0_i32 : i32, i32, i32
  }
  func.func @transform_1(%arg0: i32, %arg1: i32) -> (i32, i32, i32) {
    %c0_i32 = arith.constant 0 : i32
    %c0_i32_0 = arith.constant 0 : i32
    return %arg0, %arg1, %c0_i32 : i32, i32, i32
  }
}

</mosaic_0001>

<llo_original>
// kernel: tpu_custom_call.1
$region0: #{tpu_custom_call.1}
  #allocation0 [shape = 'u32[]', space=smem, size = 0x4, offset = 0x4, fixed_abs, tag = 'smem constant byte address 0x4 - core index']
  #allocation1 [shape = 'u32[144,128]{1,0:T(1,128)}', space=vmem, size = 0x12000, scoped, tag = 'internal scratch']
  #allocation2 [shape = 'f32[1,256]{1,0:T(1,128)}', space=vmem, size = 0x400, scoped, tag = 'scratch operand']
  #allocation3 [shape = 'f32[1,1]{1,0:T(1,128)}', space=vmem, size = 0x200, scoped, tag = 'scratch operand']
  #allocation4 [shape = 'f32[8,1]{1,0:T(8,128)}', space=vmem, size = 0x1000, scoped, tag = 'scratch operand']
  #allocation5 [shape = 'f32[8,1]{1,0:T(8,128)}', space=vmem, size = 0x1000, scoped, tag = 'scratch operand']
  #allocation6 [shape = 'f32[8,1]{1,0:T(8,128)}', space=vmem, size = 0x1000, scoped, tag = 'scratch operand']
  %s0 = inlined_call_operand.hbm [shape: f32[2,16,256], index: 0, kind: input, shape index: {}]
  %s1 = inlined_call_operand.vmem [shape: f32[2,16,1], index: 1, kind: output, shape index: {}]
  %s2 = sld [smem:[#allocation0]]
  $region45: #{tpu_custom_call.1} parent=0
    _
  %s4 = ssub.s32 1, %s2
  %s5 = scalar_select 0, %s4, %s2
  $region1: #{tpu_custom_call.1} parent=0
    #allocation7 [shape = 'u8[16384]{0}', space=vmem, size = 0x4000, scoped, tag = 'input window, operand 0']
    #allocation8 [shape = 's32[2]{0}', space=sflag, size = 0x8, scoped, tag = 'scoped memory for tpu_custom_call.1']
    %6 = vsyncpa [#allocation8], 0
    %s7 = scalar_lea.sflag [#allocation8], 1
    %8 = vsyncpa %s7, 0
    loop: start=0, step=1, limit=6
    $region2: #{tpu_custom_call.1} parent=1 // loop_pre_header
      _
    $region3: #{tpu_custom_call.1} parent=1 // loop_header
      %s10 = sphi 0, %s14
      %p11 = scmp.ge.s32.totalorder %s10, 6
      %s17 = sphi 0, %s29
      %s18 = sphi 0, %s25
      %s19 = sphi 0, %s17
      %s20 = sphi 0, %s18
      %s21 = sphi 0, %s19
      %s22 = sphi 0, %s20
      %s34 = sphi 0, %s36
      %s37 = sphi 0, %s34
      %s38 = sphi 0, %s37
      %s54 = sphi 0, %s38
      %s62 = sphi 0, %s64
      %s65 = sphi 0, %s62
      %s66 = sphi 0, %s65
      %s82 = sphi 0, %s66
    $region4: #{tpu_custom_call.1} parent=1 // loop_header_branch
      %13 = sbr.rel (%p11) target = $region8
    $region5: #{tpu_custom_call.1} parent=1 // loop_body
      %s15 = ssub.s32 %s10, 1
      %s16 = ssub.s32 %s10, 2
      %s23 = sadd.s32 1, %s18
      %p24 = scmp.ge.s32.totalorder %s23, 2
      %s25 = scalar_select %p24, 0, %s23
      %s26 = sadd.s32 1, %s17
      %s27 = scalar_select %p24, %s26, %s17
      %p28 = scmp.ge.s32.totalorder %s27, 2
      %s29 = scalar_select %p28, 0, %s27
      %s30 = ssub.s32 %s17, %s29
      %s31 = ssub.s32 %s18, %s25
      %s32 = sor.u32 %s30, %s31
      %p33 = scmp.eq.s32.totalorder %s32, 0
      %s35 = sadd.s32 %s34, 1
      %s36 = scalar_select %p33, %s34, %s35
      %p39 = pneg %p33
      %p40 = scmp.eq.s32.totalorder %s10, 3
      %p41 = por %p39, %p40
      %p42 = scmp.ne.s32.totalorder %s34, %s37
      %p43 = scmp.eq.s32.totalorder %s10, 0
      %p44 = por %p42, %p43
      %p45 = scmp.ne.s32.totalorder %s34, %s37
      %p46 = scmp.eq.s32.totalorder %s15, 3
      %p47 = por %p45, %p46
      %p48 = scmp.ne.s32.totalorder %s37, %s38
      %p49 = scmp.eq.s32.totalorder %s15, 0
      %p50 = por %p48, %p49
      %p51 = scmp.ne.s32.totalorder %s37, %s38
      %p52 = scmp.eq.s32.totalorder %s16, 3
      %p53 = por %p51, %p52
      %p55 = scmp.ne.s32.totalorder %s38, %s54
      %p56 = scmp.eq.s32.totalorder %s16, 0
      %p57 = por %p55, %p56
      %s58 = ssub.s32 %s17, %s29
      %s59 = ssub.s32 %s18, %s25
      %s60 = sor.u32 %s58, %s59
      %p61 = scmp.eq.s32.totalorder %s60, 0
      %s63 = sadd.s32 %s62, 1
      %s64 = scalar_select %p61, %s62, %s63
      %p67 = pneg %p61
      %p68 = scmp.eq.s32.totalorder %s10, 3
      %p69 = por %p67, %p68
      %p70 = scmp.ne.s32.totalorder %s62, %s65
      %p71 = scmp.eq.s32.totalorder %s10, 0
      %p72 = por %p70, %p71
      %p73 = scmp.ne.s32.totalorder %s62, %s65
      %p74 = scmp.eq.s32.totalorder %s15, 3
      %p75 = por %p73, %p74
      %p76 = scmp.ne.s32.totalorder %s65, %s66
      %p77 = scmp.eq.s32.totalorder %s15, 0
      %p78 = por %p76, %p77
      %p79 = scmp.ne.s32.totalorder %s65, %s66
      %p80 = scmp.eq.s32.totalorder %s16, 3
      %p81 = por %p79, %p80
      %p83 = scmp.ne.s32.totalorder %s66, %s82
      %p84 = scmp.eq.s32.totalorder %s16, 0
      %p85 = por %p83, %p84
      %p86 = scmp.le.s32.totalorder 1, %s10
      %p87 = scmp.lt.s32.totalorder %s10, 5
      %p88 = pnand %p86, %p87
      %p89 = pneg %p88
      // Predicated region
      $region9: #{tpu_custom_call.1} parent=5 // pred_check
        _
      $region10: #{tpu_custom_call.1} parent=5 // pred_check_branch
        %91 = sbr.rel (%p88) target = $region12
      $region11: #{tpu_custom_call.1} parent=5 // pred_region
        %s92 = ssub.s32 %s10, 1
      $region12: #{tpu_custom_call.1} parent=5 // pred_fallthru
        _
      %p93 = scmp.lt.s32.totalorder %s10, 4
      // Predicated region
      $region13: #{tpu_custom_call.1} parent=5 // pred_check
        %p94 = pneg %p93
      $region14: #{tpu_custom_call.1} parent=5 // pred_check_branch
        %96 = sbr.rel (%p94) target = $region16
      $region15: #{tpu_custom_call.1} parent=5 // pred_region
        // Predicated region
        $region17: #{tpu_custom_call.1} parent=15 // pred_check
          %p97 = pneg %p44
        $region18: #{tpu_custom_call.1} parent=15 // pred_check_branch
          %99 = sbr.rel (%p97) target = $region20
        $region19: #{tpu_custom_call.1} parent=15 // pred_region
          %s100 = sand.u32 %s34, 1
          %s101 = scalar_lea.sflag [#allocation8], %s100
          %s102 = sand.u32 %s34, 1
          %s103 = smul.addr %s102, 16
          %s104 = scalar_lea.vmem [#allocation7], %s103
          %s106 = ssub.s32 256, 256
          %107 = vsyncadd %s101, %s106
          %s108 = smul.addr %s18, 2
          %s109 = smul.addr %s17, 4
          %s110 = sadd.s32 %s108, %s109
          %s111 = smul.addr %s110, 128
          %s112 = scalar_lea.hbm %s0, %s111
          %s114 = sshll.u32 %s104, 4
          %s115 = int_to_ptr.vmem [resolvable:$true] %s114
          %117 = dma.hbm_to_vmem [thread:$0]  %s112, 256, %s115, %s101
        $region20: #{tpu_custom_call.1} parent=15 // pred_fallthru
          _
      $region16: #{tpu_custom_call.1} parent=5 // pred_fallthru
        _
      %p118 = scmp.le.s32.totalorder 1, %s10
      %p119 = scmp.lt.s32.totalorder %s10, 5
      %p120 = pnand %p118, %p119
      %p121 = pneg %p120
      // Predicated region
      $region21: #{tpu_custom_call.1} parent=5 // pred_check
        _
      $region22: #{tpu_custom_call.1} parent=5 // pred_check_branch
        %123 = sbr.rel (%p120) target = $region24
      $region23: #{tpu_custom_call.1} parent=5 // pred_region
        %s124 = ssub.s32 %s10, 1
        %s125 = sand.u32 %s37, 1
        %s126 = scalar_lea.sflag [#allocation8], %s125
        %s127 = sand.u32 %s37, 1
        %s128 = smul.addr %s127, 16
        %s129 = scalar_lea.vmem [#allocation7], %s128
        // Predicated region
        $region25: #{tpu_custom_call.1} parent=23 // pred_check
          %p130 = pneg %p50
        $region26: #{tpu_custom_call.1} parent=23 // pred_check_branch
          %132 = sbr.rel (%p130) target = $region28
        $region27: #{tpu_custom_call.1} parent=23 // pred_region
          %133 = dma.done %s126, 256
        $region28: #{tpu_custom_call.1} parent=23 // pred_fallthru
          _
        %s134 = sand.u32 %s37, 1
        %s135 = scalar_lea.sflag [#allocation8], %s134
        %s136 = sand.u32 %s37, 1
        %s137 = smul.addr %s136, 16
        %s138 = scalar_lea.vmem [#allocation7], %s137
        %p139 = pneg %p50
        %p140 = pneg %p47
        %p141 = pneg %p78
        %p142 = pneg %p75
        %p143 = scmp.lt.s32.totalorder %s19, 1
        %s144 = scalar_select %p143, %s19, 1
        %p145 = scmp.lt.s32.totalorder %s20, 1
        %s146 = scalar_select %p145, %s20, 1
        %s147 = smul.addr %s144, 2
        %s148 = sadd.s32 %s146, %s147
        %s149 = smul.addr %s148, 8
        %s150 = scalar_lea.vmem %s1, %s149
        %p151 = scmp.lt.s32.totalorder %s19, 1
        %s152 = scalar_select %p151, %s19, 1
        %p153 = scmp.lt.s32.totalorder %s20, 1
        %s154 = scalar_select %p153, %s20, 1
        %s155 = smul.addr %s152, 2
        %s156 = sadd.s32 %s154, %s155
        %s157 = smul.addr %s156, 8
        %s158 = scalar_lea.vmem %s1, %s157
        %p159 = scmp.eq.s32.totalorder %s20, 0
        // Predicated region
        $region29: #{tpu_custom_call.1} parent=23 // pred_check
          %p160 = pneg %p159
        $region30: #{tpu_custom_call.1} parent=23 // pred_check_branch
          %162 = sbr.rel (%p160) target = $region32
        $region31: #{tpu_custom_call.1} parent=23 // pred_region
          %v163 = vlaneseq
          %vm164 = vcmp.ge.s32.totalorder %v163, 0
          %vm165 = vcmp.lt.s32.totalorder %v163, 256
          %vm166 = vmand %vm164, %vm165
          %167 = vst.msk [vmem:[#allocation2] sm:$0x3] %vm166, 0.0
          %vm168 = vcmask 0
          %169 = vst.msk [vmem:[#allocation3] sm:$0x1] %vm168, 1.0
        $region32: #{tpu_custom_call.1} parent=23 // pred_fallthru
          _
        %vm170 = vcmask 7168
        %171 = vst.msk [vmem:[#allocation4] sm:$0xff] %vm170, -inf
        %v172 = vld [vmem:[%s129] sm:$0xff]
        %173 = vmax.xlane.f32.xlu0 %v172
        %v174 = vpop.xlane.xlu0 %173
        %v175 = vld [vmem:[#allocation4] sm:$0xff]
        %v176 = vmax.f32 %v175, %v174
        %177 = vst.msk [vmem:[#allocation4] sm:$0xff] %vm170, %v176
        %s178 = scalar_lea.vmem %s129, 8 [#allocation7]
        %v179 = vld [vmem:[%s178] sm:$0xff]
        %180 = vmax.xlane.f32.xlu0 %v179
        %v181 = vpop.xlane.xlu0 %180
        %v182 = vld [vmem:[#allocation4] sm:$0xff]
        %v183 = vmax.f32 %v182, %v181
        %184 = vst.msk [vmem:[#allocation4] sm:$0xff] %vm170, %v183
        %v185 = vld [vmem:[#allocation4] sm:$0xff]
        %v186 = vmul.f32 %v185, 0.5
        %187 = vst.msk [vmem:[#allocation6] sm:$0xff] %vm170, 0.0
        %188 = vst.msk [vmem:[#allocation5] sm:$0xff] %vm170, 0.0
        %v189 = vlaneseq
        %v190 = vshrl.u32 %v189, 7
        %vm191 = vcmp.eq.s32.totalorder %v190, 0
        %v192 = vld [vmem:[%s129] sm:$0xff]
        %v193 = vmul.f32 %v192, 0.5
        %195 = vset.pattern.permute.xlu0 0
        %196 = vperm.xlu0 %195, %v186
        %v197 = vpop.permute.xlu0 %196
        %v199 = vsub.f32 %v193, %v197
        %v200 = vmul.f32 %v199, 1.442695
        %v201 = vpow.pop %v200
        %v202 = vrot.slane %v201, 7
        %v203 = vld [vmem:[#allocation2] sm:$0x1]
        %v204 = vsel %vm191, 1, 0
        %vm205 = vcmp.eq.s32.totalorder %v204, 1
        %v207 = vlaneseq
        %v208 = vshrl.u32 %v207, 7
        %v209 = vsub.s32 0, %v208
        %v210 = vrot.slane %v203, %v209
        %v212 = vsel %vm205, %v210, %v202
        %v213 = vld [vmem:[#allocation6] sm:$0xff]
        %v214 = vmul.f32 %v201, %v212
        %215 = vadd.xlane.f32.xlu0 %v214
        %v216 = vpop.xlane.xlu0 %215
        %v217 = vadd.f32 %v213, %v216
        %218 = vst.msk [vmem:[#allocation6] sm:$0xff] %vm170, %v217
        %v219 = vld [vmem:[#allocation5] sm:$0xff]
        %220 = vadd.xlane.f32.xlu0 %v201
        %v221 = vpop.xlane.xlu0 %220
        %v222 = vadd.f32 %v219, %v221
        %223 = vst.msk [vmem:[#allocation5] sm:$0xff] %vm170, %v222
        %v225 = vcombine.high %v201, %v201
        %v227 = vunpack.c.l.s4 1966171168
        %v228 = vunpack.c.0.s8 %v227
        %v229 = vlaneseq
        %v230 = vshrl.u32 %v229, 7
        %v231 = vsub.s32 %v228, %v230
        %v232 = vrot.slane %v225, %v231
        %v233 = vcombine.high %v232, %v232
        %v235 = vunpack.c.l.s4 1966171168
        %v236 = vunpack.c.0.s8 %v235
        %v237 = vlaneseq
        %v238 = vshrl.u32 %v237, 7
        %v239 = vsub.s32 %v236, %v238
        %v240 = vrot.slane %v233, %v239
        %v241 = vcombine.high %v240, %v240
        %v243 = vlaneseq
        %vm244 = vcmp.ge.s32.totalorder %v243, 0
        %vm245 = vcmp.lt.s32.totalorder %v243, 128
        %vm246 = vmand %vm244, %vm245
        %247 = vst.msk [vmem:[#allocation2] sm:$0x1] %vm246, %v241
        %v248 = vld [vmem:[%s178] sm:$0xff]
        %v249 = vmul.f32 %v248, 0.5
        %v250 = vsub.f32 %v249, %v197
        %v251 = vmul.f32 %v250, 1.442695
        %v252 = vpow.pop %v251
        %v253 = vrot.slane %v252, 7
        %s254 = scalar_lea.vmem [#allocation2], 1
        %v255 = vld [vmem:[%s254] sm:$0x1]
        %v257 = vlaneseq
        %v258 = vshrl.u32 %v257, 7
        %v259 = vsub.s32 0, %v258
        %v260 = vrot.slane %v255, %v259
        %v262 = vsel %vm205, %v260, %v253
        %v263 = vld [vmem:[#allocation6] sm:$0xff]
        %v264 = vmul.f32 %v252, %v262
        %265 = vadd.xlane.f32.xlu0 %v264
        %v266 = vpop.xlane.xlu0 %265
        %v267 = vadd.f32 %v263, %v266
        %268 = vst.msk [vmem:[#allocation6] sm:$0xff] %vm170, %v267
        %v269 = vld [vmem:[#allocation5] sm:$0xff]
        %270 = vadd.xlane.f32.xlu0 %v252
        %v271 = vpop.xlane.xlu0 %270
        %v272 = vadd.f32 %v269, %v271
        %273 = vst.msk [vmem:[#allocation5] sm:$0xff] %vm170, %v272
        %v275 = vcombine.high %v252, %v252
        %v277 = vunpack.c.l.s4 1966171168
        %v278 = vunpack.c.0.s8 %v277
        %v279 = vlaneseq
        %v280 = vshrl.u32 %v279, 7
        %v281 = vsub.s32 %v278, %v280
        %v282 = vrot.slane %v275, %v281
        %v283 = vcombine.high %v282, %v282
        %v285 = vunpack.c.l.s4 1966171168
        %v286 = vunpack.c.0.s8 %v285
        %v287 = vlaneseq
        %v288 = vshrl.u32 %v287, 7
        %v289 = vsub.s32 %v286, %v288
        %v290 = vrot.slane %v283, %v289
        %v291 = vcombine.high %v290, %v290
        %293 = vst.msk [vmem:[%s254] sm:$0x1] %vm246, %v291
        %v294 = vld [vmem:[#allocation5] sm:$0xff]
        %v295 = vrot.slane %v294, 7
        %v296 = vld [vmem:[#allocation3] sm:$0x1]
        %v298 = vlaneseq
        %v299 = vshrl.u32 %v298, 7
        %v300 = vsub.s32 0, %v299
        %v301 = vrot.slane %v296, %v300
        %v303 = vsel %vm191, %v301, %v295
        %v304 = vld [vmem:[#allocation6] sm:$0xff]
        %v305 = vmul.f32 %v303, %v294
        %v306 = vrcp.pop %v305
        %v307 = vmul.f32 %v304, %v306
        %308 = vst.msk [vmem:[%s158] sm:$0xff] %vm170, %v307
        %vm309 = vcmask 7175
        %310 = vst.msk [vmem:[#allocation3 - $0x7] sm:$0x80] %vm309, %v294
        %p311 = scmp.lt.s32.totalorder %s19, 1
        %s312 = scalar_select %p311, %s19, 1
        %p313 = scmp.lt.s32.totalorder %s20, 1
        %s314 = scalar_select %p313, %s20, 1
        %s315 = smul.addr %s312, 2
        %s316 = sadd.s32 %s314, %s315
        %s317 = smul.addr %s316, 8
        %s318 = scalar_lea.vmem %s1, %s317
        // Predicated region
        $region33: #{tpu_custom_call.1} parent=23 // pred_check
          %p319 = pneg %p75
        $region34: #{tpu_custom_call.1} parent=23 // pred_check_branch
          %321 = sbr.rel (%p319) target = $region36
        $region35: #{tpu_custom_call.1} parent=23 // pred_region
          _
        $region36: #{tpu_custom_call.1} parent=23 // pred_fallthru
          _
      $region24: #{tpu_custom_call.1} parent=5 // pred_fallthru
        _
      %p322 = scmp.le.s32.totalorder 2, %s10
      // Predicated region
      $region37: #{tpu_custom_call.1} parent=5 // pred_check
        %p323 = pneg %p322
      $region38: #{tpu_custom_call.1} parent=5 // pred_check_branch
        %325 = sbr.rel (%p323) target = $region40
      $region39: #{tpu_custom_call.1} parent=5 // pred_region
        %s326 = ssub.s32 %s10, 2
        // Predicated region
        $region41: #{tpu_custom_call.1} parent=39 // pred_check
          %p327 = pneg %p81
        $region42: #{tpu_custom_call.1} parent=39 // pred_check_branch
          %329 = sbr.rel (%p327) target = $region44
        $region43: #{tpu_custom_call.1} parent=39 // pred_region
          %p330 = scmp.lt.s32.totalorder %s21, 1
          %s331 = scalar_select %p330, %s21, 1
          %p332 = scmp.lt.s32.totalorder %s22, 1
          %s333 = scalar_select %p332, %s22, 1
          %s334 = smul.addr %s331, 2
          %s335 = sadd.s32 %s333, %s334
          %s336 = smul.addr %s335, 8
          %s337 = scalar_lea.vmem %s1, %s336
        $region44: #{tpu_custom_call.1} parent=39 // pred_fallthru
          _
      $region40: #{tpu_custom_call.1} parent=5 // pred_fallthru
        _
    $region6: #{tpu_custom_call.1} parent=1 // loop_footer
      %s14 = sadd.s32 1, %s10
    $region7: #{tpu_custom_call.1} parent=1 // loop_footer_branch
      %9 = sbr.rel target = $region3
    $region8: #{tpu_custom_call.1} parent=1 // loop_exit
      _
    %338 = vsyncpa [#allocation8], 1
    %s339 = scalar_lea.sflag [#allocation8], 1
    %340 = vsyncpa %s339, 1

</llo_original>
